<compile_context>
chip_gen: v7x
topology: tpu7x:2x2x1
jax: 0.10.0
libtpu: 0.0.40
codegen_flags: <defaults>
</compile_context>

<pallas_src>
import functools
import math

import jax
import jax.numpy as jnp
from jax.experimental import pallas as pl
from jax.experimental.pallas import tpu as pltpu


MXU_DTYPE = jnp.bfloat16          # native MXU dtype on v5e / v6e / v7x


# ----------------------------------------------------------------------------
# ALiBi slopes (same math as the PyTorch _get_alibi_slopes)
# ----------------------------------------------------------------------------
def get_alibi_slopes(total_num_heads: int) -> jnp.ndarray:
    closest_power_of_2 = 2 ** math.floor(math.log2(total_num_heads))
    base = 2 ** (-(2 ** (-(math.log2(closest_power_of_2) - 3))))
    powers = jnp.arange(1, 1 + closest_power_of_2, dtype=jnp.float32)
    slopes = jnp.power(jnp.float32(base), powers)
    if closest_power_of_2 != total_num_heads:
        extra_base = 2 ** (-(2 ** (-(math.log2(2 * closest_power_of_2) - 3))))
        num_remaining = min(closest_power_of_2,
                            total_num_heads - closest_power_of_2)
        extra_powers = jnp.arange(1, 1 + 2 * num_remaining, 2,
                                  dtype=jnp.float32)
        slopes = jnp.concatenate(
            [slopes, jnp.power(jnp.float32(extra_base), extra_powers)])
    return slopes


# ----------------------------------------------------------------------------
# Tile-size helper: largest tile <= preferred that divides `dim` and is a
# multiple of `align`; falls back to the full dim (always legal as a block).
# ----------------------------------------------------------------------------
def _pick_tile(dim: int, preferred: int, align: int) -> int:
    if dim <= preferred:
        return dim
    t = (preferred // align) * align
    while t >= align:
        if dim % t == 0:
            return t
        t -= align
    # TODO(synk): falling back to the full dim can blow VMEM for odd/huge
    # shapes (especially on v7x's 64 MiB VMEM); real deployments should pad.
    return dim


# ----------------------------------------------------------------------------
# LayerNorm kernel — tiled over rows (seq), f32 math, bf16 output
# ----------------------------------------------------------------------------
def _layernorm_kernel(x_ref, g_ref, b_ref, o_ref, *, eps):
    x = x_ref[...].astype(jnp.float32)
    mean = jnp.mean(x, axis=-1, keepdims=True)
    var = jnp.mean(jnp.square(x - mean), axis=-1, keepdims=True)
    y = (x - mean) * jax.lax.rsqrt(var + eps)
    o_ref[...] = (y * g_ref[...] + b_ref[...]).astype(o_ref.dtype)


def layernorm(x, gamma, beta, eps, *, out_dtype=MXU_DTYPE, block_rows=256,
              row_bytes_budget=4 << 20):
    M, H = x.shape
    # cap the row tile by a per-buffer VMEM byte budget (v7x has 64 MiB VMEM)
    max_rows = max(8, (row_bytes_budget // (H * x.dtype.itemsize)) // 8 * 8)
    tm = _pick_tile(M, min(block_rows, max_rows), 8)
    assert M % tm == 0
    g = gamma.reshape(1, H).astype(jnp.float32)
    b = beta.reshape(1, H).astype(jnp.float32)
    return pl.pallas_call(
        functools.partial(_layernorm_kernel, eps=eps),
        out_shape=jax.ShapeDtypeStruct((M, H), out_dtype),
        grid_spec=pltpu.PrefetchScalarGridSpec(
            num_scalar_prefetch=0,
            grid=(M // tm,),
            in_specs=[pl.BlockSpec((tm, H), lambda i: (i, 0)),
                      pl.BlockSpec((1, H), lambda i: (0, 0)),
                      pl.BlockSpec((1, H), lambda i: (0, 0))],
            out_specs=pl.BlockSpec((tm, H), lambda i: (i, 0)),
        ),
        compiler_params=pltpu.CompilerParams(
            dimension_semantics=("parallel",)),
    )(x, g, b)


# ----------------------------------------------------------------------------
# Tiled linear kernel: y = x @ W + b  (+ exact GELU, + residual)
#   grid = (M tiles, N tiles, K tiles), K last ("arbitrary"), f32 VMEM acc.
#   Operands are fed to the MXU in bf16; only the accumulator / epilogue is
#   f32 (preferred_element_type).
# ----------------------------------------------------------------------------
def _linear_kernel(x_ref, w_ref, b_ref, *rest, activation, has_residual):
    if has_residual:
        r_ref, o_ref, acc_ref = rest
    else:
        o_ref, acc_ref = rest

    @pl.when(pl.program_id(2) == 0)
    def _init():
        acc_ref[...] = jnp.zeros_like(acc_ref)

    acc_ref[...] += jnp.dot(x_ref[...], w_ref[...],
                            preferred_element_type=jnp.float32)

    @pl.when(pl.program_id(2) == pl.num_programs(2) - 1)
    def _finalize():
        y = acc_ref[...] + b_ref[...]
        if activation == "gelu":
            # exact (erf) GELU, matching torch.nn.GELU default
            y = 0.5 * y * (1.0 + jax.lax.erf(y * 0.7071067811865476))
        if has_residual:
            y = y + r_ref[...].astype(jnp.float32)
        o_ref[...] = y.astype(o_ref.dtype)


def linear(x, w, b, residual=None, activation=None, *, out_dtype=None,
           bm=512, bn=512, bk=512, vmem_limit_bytes=64 * 1024 * 1024):
    M, K = x.shape
    K2, N = w.shape
    assert K == K2
    if x.dtype != MXU_DTYPE:
        x = x.astype(MXU_DTYPE)
    if w.dtype != MXU_DTYPE:
        # TODO(synk): in a real serving stack the weights are pre-cast to bf16
        # once at load time instead of per forward call.
        w = w.astype(MXU_DTYPE)
    if out_dtype is None:
        out_dtype = MXU_DTYPE
    tm = _pick_tile(M, bm, 8)
    tn = _pick_tile(N, bn, 128)
    tk = _pick_tile(K, bk, 128)
    assert M % tm == 0 and N % tn == 0 and K % tk == 0
    b2 = b.reshape(1, N).astype(jnp.float32)
    has_residual = residual is not None

    in_specs = [
        pl.BlockSpec((tm, tk), lambda i, j, k: (i, k)),
        pl.BlockSpec((tk, tn), lambda i, j, k: (k, j)),
        pl.BlockSpec((1, tn), lambda i, j, k: (0, j)),
    ]
    inputs = [x, w, b2]
    if has_residual:
        in_specs.append(pl.BlockSpec((tm, tn), lambda i, j, k: (i, j)))
        inputs.append(residual)

    return pl.pallas_call(
        functools.partial(_linear_kernel, activation=activation,
                          has_residual=has_residual),
        out_shape=jax.ShapeDtypeStruct((M, N), out_dtype),
        grid_spec=pltpu.PrefetchScalarGridSpec(
            num_scalar_prefetch=0,
            grid=(M // tm, N // tn, K // tk),
            in_specs=in_specs,
            out_specs=pl.BlockSpec((tm, tn), lambda i, j, k: (i, j)),
            scratch_shapes=[pltpu.VMEM((tm, tn), jnp.float32)],
        ),
        compiler_params=pltpu.CompilerParams(
            dimension_semantics=("parallel", "parallel", "arbitrary"),
            vmem_limit_bytes=vmem_limit_bytes),
    )(*inputs)


# ----------------------------------------------------------------------------
# Flash-style causal attention with ALiBi, reading the fused qkv directly.
#   qkv : [seq, 3*hidden] bf16, column layout [q_heads | k_heads | v_heads]
#   out : [seq, hidden]   bf16 (lane-dense, per-head column block)
# NOTE: this column layout matches the reference below; HF Bloom checkpoints
# store the fused QKV per-head-interleaved and must be permuted at load time.
# ----------------------------------------------------------------------------
def _flash_attn_kernel(slopes_ref, q_ref, k_ref, v_ref, o_ref,
                       m_sc, l_sc, acc_sc, *, scale, block_q, block_kv):
    h = pl.program_id(0)
    qi = pl.program_id(1)
    ki = pl.program_id(2)

    @pl.when(ki == 0)
    def _init():
        m_sc[...] = jnp.full_like(m_sc, -jnp.inf)
        l_sc[...] = jnp.zeros_like(l_sc)
        acc_sc[...] = jnp.zeros_like(acc_sc)

    q_start = qi * block_q
    k_start = ki * block_kv

    def _update(needs_mask):
        # scale folded into q: (tq, hd) elements instead of (tq, tkv) scores;
        # python-float scale stays weak-typed so q remains bf16 for the MXU.
        q = q_ref[...] * scale
        s = jax.lax.dot_general(
            q, k_ref[...], (((1,), (1,)), ((), ())),
            preferred_element_type=jnp.float32)

        # shared relative-position tile: rel = k_pos - q_pos
        rel = ((k_start - q_start)
               + jax.lax.broadcasted_iota(jnp.int32, (block_q, block_kv), 1)
               - jax.lax.broadcasted_iota(jnp.int32, (block_q, block_kv), 0))
        # ALiBi bias slope*(j-i); equivalent to HF's slope*j under softmax
        # (per-row constant shift) — do not "fix" this.
        s = s + slopes_ref[h] * rel.astype(jnp.float32)
        if needs_mask:
            s = jnp.where(rel <= 0, s, jnp.float32(-1e30))

        m_prev = m_sc[...]
        m_new = jnp.maximum(m_prev, jnp.max(s, axis=-1, keepdims=True))
        alpha = jnp.exp(m_prev - m_new)
        p = jnp.exp(s - m_new)
        l_sc[...] = alpha * l_sc[...] + jnp.sum(p, axis=-1, keepdims=True)
        acc_sc[...] = alpha * acc_sc[...] + jnp.dot(
            p.astype(v_ref.dtype), v_ref[...],
            preferred_element_type=jnp.float32)
        m_sc[...] = m_new

    # kv tile strictly below the diagonal: fully visible, skip the mask select
    @pl.when(k_start + block_kv - 1 <= q_start)
    def _full():
        _update(False)

    # diagonal / partially visible kv tile: apply the causal mask
    @pl.when(jnp.logical_and(k_start + block_kv - 1 > q_start,
                             k_start <= q_start + block_q - 1))
    def _partial():
        _update(True)

    # kv tiles entirely above the diagonal hit neither branch (compute skipped;
    # their DMA is also skipped via the clamped index_map below).

    @pl.when(ki == pl.num_programs(2) - 1)
    def _finalize():
        inv_l = pl.reciprocal(l_sc[...], approx=True)
        o_ref[...] = (acc_sc[...] * inv_l).astype(o_ref.dtype)


def flash_attention(qkv, alibi_slopes, *, n_head, head_dim, scale,
                    block_q=256, block_kv=256,
                    vmem_limit_bytes=64 * 1024 * 1024):
    seq = qkv.shape[0]
    hidden = n_head * head_dim
    assert qkv.shape[1] == 3 * hidden
    # TODO(synk): head_dim that is not a multiple of 128 (small Bloom configs)
    # needs a padded / per-head-gathered layout; Bloom-176B (head_dim=128) is
    # the supported layout here.
    assert head_dim % 128 == 0, "attention kernel requires head_dim % 128 == 0"

    tq = _pick_tile(seq, block_q, 8)
    tkv = _pick_tile(seq, block_kv, 8)
    grid = (n_head, seq // tq, seq // tkv)
    slopes = alibi_slopes.astype(jnp.float32)

    def q_map(h, qi, ki, s):
        return (qi, h)

    # clamp causally-dead kv tiles onto the last visible tile so Pallas skips
    # their HBM DMA entirely (the pl.when above skips the compute).
    def k_map(h, qi, ki, s):
        last = (qi * tq + tq - 1) // tkv
        return (jnp.minimum(ki, last), n_head + h)

    def v_map(h, qi, ki, s):
        last = (qi * tq + tq - 1) // tkv
        return (jnp.minimum(ki, last), 2 * n_head + h)

    return pl.pallas_call(
        functools.partial(_flash_attn_kernel, scale=scale,
                          block_q=tq, block_kv=tkv),
        out_shape=jax.ShapeDtypeStruct((seq, hidden), qkv.dtype),
        grid_spec=pltpu.PrefetchScalarGridSpec(
            num_scalar_prefetch=1,   # alibi slopes -> SMEM
            grid=grid,
            in_specs=[
                pl.BlockSpec((tq, head_dim), q_map),
                pl.BlockSpec((tkv, head_dim), k_map),
                pl.BlockSpec((tkv, head_dim), v_map),
            ],
            out_specs=pl.BlockSpec((tq, head_dim), q_map),
            scratch_shapes=[pltpu.VMEM((tq, 1), jnp.float32),          # m
                            pltpu.VMEM((tq, 1), jnp.float32),          # l
                            pltpu.VMEM((tq, head_dim), jnp.float32)],  # acc
        ),
        compiler_params=pltpu.CompilerParams(
            dimension_semantics=("parallel", "parallel", "arbitrary"),
            vmem_limit_bytes=vmem_limit_bytes),
    )(slopes, qkv, qkv, qkv)


# ----------------------------------------------------------------------------
# BloomBlock forward (residual stream kept in f32; activations in bf16)
# ----------------------------------------------------------------------------
def bloom_block_forward(hidden_states, params, *, n_head, eps,
                        apply_residual_connection_post_layernorm=False):
    seq, hidden = hidden_states.shape
    head_dim = hidden // n_head
    scale = head_dim ** (-0.5)

    # input layernorm (bf16 activation out)
    ln1 = layernorm(hidden_states, params["ln1_g"], params["ln1_b"], eps)
    residual = ln1 if apply_residual_connection_post_layernorm else hidden_states

    # self attention: fused QKV projection -> flash attention -> dense(+res)
    qkv = linear(ln1, params["qkv_w"], params["qkv_b"])
    attn = flash_attention(qkv, params["alibi_slopes"],
                           n_head=n_head, head_dim=head_dim, scale=scale)
    attn_out = linear(attn, params["dense_w"], params["dense_b"],
                      residual=residual, out_dtype=jnp.float32)

    # post-attention layernorm
    ln2 = layernorm(attn_out, params["ln2_g"], params["ln2_b"], eps)
    residual2 = ln2 if apply_residual_connection_post_layernorm else attn_out

    # MLP: h->4h (+gelu), 4h->h with fused residual add
    h4 = linear(ln2, params["fc1_w"], params["fc1_b"], activation="gelu")
    out = linear(h4, params["fc2_w"], params["fc2_b"], residual=residual2,
                 out_dtype=jnp.float32)
    return out


# ----------------------------------------------------------------------------
# Pure-JAX reference (for a correctness sanity check)
# ----------------------------------------------------------------------------
def bloom_block_reference(hidden_states, params, *, n_head, eps,
                          apply_residual_connection_post_layernorm=False):
    hi = jax.lax.Precision.HIGHEST

    def ln(x, g, b):
        m = jnp.mean(x, -1, keepdims=True)
        v = jnp.mean((x - m) ** 2, -1, keepdims=True)
        return (x - m) * jax.lax.rsqrt(v + eps) * g + b

    seq, hidden = hidden_states.shape
    head_dim = hidden // n_head
    scale = head_dim ** (-0.5)

    ln1 = ln(hidden_states, params["ln1_g"], params["ln1_b"])
    residual = ln1 if apply_residual_connection_post_layernorm else hidden_states
    qkv = jnp.dot(ln1, params["qkv_w"], precision=hi) + params["qkv_b"]
    q, k, v = jnp.split(qkv, 3, axis=-1)
    qh = q.reshape(seq, n_head, head_dim).transpose(1, 0, 2)
    kh = k.reshape(seq, n_head, head_dim).transpose(1, 0, 2)
    vh = v.reshape(seq, n_head, head_dim).transpose(1, 0, 2)
    s = jnp.einsum("hqd,hkd->hqk", qh, kh, precision=hi) * scale
    pos = jnp.arange(seq)
    rel = (pos[None, :] - pos[:, None]).astype(jnp.float32)
    s = s + params["alibi_slopes"].reshape(n_head, 1, 1) * rel[None]
    mask = pos[None, :] <= pos[:, None]
    s = jnp.where(mask[None], s, -1e30)
    p = jax.nn.softmax(s, axis=-1)
    o = jnp.einsum("hqk,hkd->hqd", p, vh, precision=hi)
    o = o.transpose(1, 0, 2).reshape(seq, hidden)
    attn_out = jnp.dot(o, params["dense_w"], precision=hi) + params["dense_b"]
    attn_out = attn_out + residual
    ln2 = ln(attn_out, params["ln2_g"], params["ln2_b"])
    residual2 = ln2 if apply_residual_connection_post_layernorm else attn_out
    h4 = jnp.dot(ln2, params["fc1_w"], precision=hi) + params["fc1_b"]
    h4 = 0.5 * h4 * (1.0 + jax.lax.erf(h4 / jnp.sqrt(2.0)))
    out = jnp.dot(h4, params["fc2_w"], precision=hi) + params["fc2_b"]
    return out + residual2


# ----------------------------------------------------------------------------
if __name__ == "__main__":
    # small BloomConfig-like settings (head_dim=128 like Bloom-176B; shapes
    # chosen so q/kv tiling, causal DMA-skip, K-reduction splitting and the
    # N tiling are all exercised while staying small).
    SEQ = 512
    HIDDEN = 256
    N_HEAD = 2            # head_dim = 128
    EPS = 1e-5
    APPLY_RESIDUAL_POST_LN = False

    key = jax.random.PRNGKey(0)
    keys = jax.random.split(key, 8)

    def init(k, shape, scale=0.02):
        return scale * jax.random.normal(k, shape, dtype=jnp.float32)

    params = {
        "ln1_g": jnp.ones((HIDDEN,), jnp.float32),
        "ln1_b": jnp.zeros((HIDDEN,), jnp.float32),
        "ln2_g": jnp.ones((HIDDEN,), jnp.float32),
        "ln2_b": jnp.zeros((HIDDEN,), jnp.float32),
        # weights stored as (in, out); equivalent to torch's (out, in) + x@W.T
        "qkv_w": init(keys[0], (HIDDEN, 3 * HIDDEN)),
        "qkv_b": init(keys[1], (3 * HIDDEN,)),
        "dense_w": init(keys[2], (HIDDEN, HIDDEN)),
        "dense_b": init(keys[3], (HIDDEN,)),
        "fc1_w": init(keys[4], (HIDDEN, 4 * HIDDEN)),
        "fc1_b": init(keys[5], (4 * HIDDEN,)),
        "fc2_w": init(keys[6], (4 * HIDDEN, HIDDEN)),
        "fc2_b": init(keys[7], (HIDDEN,)),
        "alibi_slopes": get_alibi_slopes(N_HEAD),
    }

    hidden_states = jax.random.normal(
        jax.random.PRNGKey(42), (SEQ, HIDDEN), dtype=jnp.float32)
    position_ids = jnp.arange(SEQ, dtype=jnp.int32)  # unused (deleted in torch)

    out = bloom_block_forward(
        hidden_states, params, n_head=N_HEAD, eps=EPS,
        apply_residual_connection_post_layernorm=APPLY_RESIDUAL_POST_LN)
    out = jax.block_until_ready(out)

    ref = bloom_block_reference(
        hidden_states, params, n_head=N_HEAD, eps=EPS,
        apply_residual_connection_post_layernorm=APPLY_RESIDUAL_POST_LN)

    assert out.shape == (SEQ, HIDDEN)
    assert bool(jnp.all(jnp.isfinite(out)))
    max_err = float(jnp.max(jnp.abs(out - ref)))
    assert bool(jnp.allclose(out, ref, atol=2e-2, rtol=2e-2)), max_err

    print("KERNEL_OK")
</pallas_src>

<mosaic_0001>
module attributes {stable_mosaic.version = 11 : i64} {
  func.func @_layernorm_kernel(%arg0: i32, %arg1: memref<256x256xf32, #tpu.memory_space<vmem>>, %arg2: memref<1x256xf32, #tpu.memory_space<vmem>>, %arg3: memref<1x256xf32, #tpu.memory_space<vmem>>, %arg4: memref<256x256xbf16, #tpu.memory_space<vmem>>) attributes {dimension_semantics = [#tpu.dimension_semantics<parallel>], iteration_bounds = array<i64: 2>, scalar_prefetch = 0 : i64, scratch_operands = 0 : i64, tpu.core_type = #tpu.core_type<tc>, window_params = [{transform_indices = @transform_0, window_bounds = array<i64: 256, 256>}, {pipeline_mode = #tpu.pipeline_mode<synchronous>, transform_indices = @transform_1, window_bounds = array<i64: 1, 256>}, {pipeline_mode = #tpu.pipeline_mode<synchronous>, transform_indices = @transform_2, window_bounds = array<i64: 1, 256>}, {transform_indices = @transform_3, window_bounds = array<i64: 256, 256>}]} {
    %c0 = arith.constant 0 : index
    %c0_0 = arith.constant 0 : index
    %0 = vector.load %arg1[%c0, %c0_0] : memref<256x256xf32, #tpu.memory_space<vmem>>, vector<256x256xf32>
    %cst = arith.constant dense<0.000000e+00> : vector<256xf32>
    %1 = vector.multi_reduction <add>, %0, %cst [1] : vector<256x256xf32> to vector<256xf32>
    %2 = vector.shape_cast %1 : vector<256xf32> to vector<256x1xf32>
    %cst_1 = arith.constant 2.560000e+02 : f32
    %3 = vector.broadcast %cst_1 : f32 to vector<256x1xf32>
    %4 = arith.divf %2, %3 : vector<256x1xf32>
    %5 = vector.broadcast %4 : vector<256x1xf32> to vector<256x256xf32>
    %6 = arith.subf %0, %5 : vector<256x256xf32>
    %7 = arith.mulf %6, %6 : vector<256x256xf32>
    %cst_2 = arith.constant dense<0.000000e+00> : vector<256xf32>
    %8 = vector.multi_reduction <add>, %7, %cst_2 [1] : vector<256x256xf32> to vector<256xf32>
    %9 = vector.shape_cast %8 : vector<256xf32> to vector<256x1xf32>
    %cst_3 = arith.constant 2.560000e+02 : f32
    %10 = vector.broadcast %cst_3 : f32 to vector<256x1xf32>
    %11 = arith.divf %9, %10 : vector<256x1xf32>
    %12 = vector.broadcast %4 : vector<256x1xf32> to vector<256x256xf32>
    %13 = arith.subf %0, %12 : vector<256x256xf32>
    %cst_4 = arith.constant 9.99999974E-6 : f32
    %14 = vector.broadcast %cst_4 : f32 to vector<256x1xf32>
    %15 = arith.addf %11, %14 : vector<256x1xf32>
    %16 = math.rsqrt %15 : vector<256x1xf32>
    %17 = vector.broadcast %16 : vector<256x1xf32> to vector<256x256xf32>
    %18 = arith.mulf %13, %17 : vector<256x256xf32>
    %c0_5 = arith.constant 0 : index
    %c0_6 = arith.constant 0 : index
    %19 = vector.load %arg2[%c0_5, %c0_6] : memref<1x256xf32, #tpu.memory_space<vmem>>, vector<1x256xf32>
    %20 = vector.broadcast %19 : vector<1x256xf32> to vector<256x256xf32>
    %21 = arith.mulf %18, %20 : vector<256x256xf32>
    %c0_7 = arith.constant 0 : index
    %c0_8 = arith.constant 0 : index
    %22 = vector.load %arg3[%c0_7, %c0_8] : memref<1x256xf32, #tpu.memory_space<vmem>>, vector<1x256xf32>
    %23 = vector.broadcast %22 : vector<1x256xf32> to vector<256x256xf32>
    %24 = arith.addf %21, %23 : vector<256x256xf32>
    %25 = arith.truncf %24 : vector<256x256xf32> to vector<256x256xbf16>
    %c0_9 = arith.constant 0 : index
    %c0_10 = arith.constant 0 : index
    %26 = vector.load %arg4[%c0_9, %c0_10] : memref<256x256xbf16, #tpu.memory_space<vmem>>, vector<256x256xbf16>
    tpu.vector_store %arg4[%c0_9, %c0_10], %25 {strides = array<i32>} : memref<256x256xbf16, #tpu.memory_space<vmem>>, vector<256x256xbf16>,
    return
  }
  func.func @transform_0(%arg0: i32) -> (i32, i32) {
    %c0_i32 = arith.constant 0 : i32
    %c0_i32_0 = arith.constant 0 : i32
    return %arg0, %c0_i32 : i32, i32
  }
  func.func @transform_1(%arg0: i32) -> (i32, i32) {
    %c0_i32 = arith.constant 0 : i32
    %c0_i32_0 = arith.constant 0 : i32
    %c0_i32_1 = arith.constant 0 : i32
    return %c0_i32, %c0_i32_0 : i32, i32
  }
  func.func @transform_2(%arg0: i32) -> (i32, i32) {
    %c0_i32 = arith.constant 0 : i32
    %c0_i32_0 = arith.constant 0 : i32
    %c0_i32_1 = arith.constant 0 : i32
    return %c0_i32, %c0_i32_0 : i32, i32
  }
  func.func @transform_3(%arg0: i32) -> (i32, i32) {
    %c0_i32 = arith.constant 0 : i32
    %c0_i32_0 = arith.constant 0 : i32
    return %arg0, %c0_i32 : i32, i32
  }
}

</mosaic_0001>

<llo_original>
// kernel: tpu_custom_call.1
$region0: #{tpu_custom_call.1}
  #allocation0 [shape = 'u32[]', space=smem, size = 0x4, offset = 0x4, fixed_abs, tag = 'smem constant byte address 0x4 - core index']
  #allocation1 [shape = 'u32[144,128]{1,0:T(1,128)}', space=vmem, size = 0x12000, scoped, tag = 'internal scratch']
  %s0 = inlined_call_operand.hbm [shape: f32[512,256], index: 0, kind: input, shape index: {}]
  %s1 = inlined_call_operand.vmem [shape: f32[1,256], index: 1, kind: input, shape index: {}]
  %s2 = inlined_call_operand.vmem [shape: f32[1,256], index: 2, kind: input, shape index: {}]
  %s3 = inlined_call_operand.hbm [shape: bf16[512,256], index: 3, kind: output, shape index: {}]
  %s4 = sld [smem:[#allocation0]]
  $region49: #{tpu_custom_call.1} parent=0
    _
  %s6 = ssub.s32 1, %s4
  %s7 = scalar_select 0, %s6, %s4
  $region1: #{tpu_custom_call.1} parent=0
    #allocation2 [shape = 'u8[524288]{0}', space=vmem, size = 0x80000, scoped, tag = 'input window, operand 0']
    #allocation3 [shape = 's32[2]{0}', space=sflag, size = 0x8, scoped, tag = 'scoped memory for tpu_custom_call.1']
    #allocation4 [shape = 's32[2]{0}', space=sflag, size = 0x8, scoped, tag = 'scoped memory for tpu_custom_call.1']
    #allocation5 [shape = 'u8[262144]{0}', space=vmem, size = 0x40000, scoped, tag = 'output window, operand 0']
    %8 = vsyncpa [#allocation3], 0
    %s9 = scalar_lea.sflag [#allocation3], 1
    %10 = vsyncpa %s9, 0
    %11 = vsyncpa [#allocation4], 0
    %s12 = scalar_lea.sflag [#allocation4], 1
    %13 = vsyncpa %s12, 0
    loop: start=0, step=1, limit=4
    $region2: #{tpu_custom_call.1} parent=1 // loop_pre_header
      _
    $region3: #{tpu_custom_call.1} parent=1 // loop_header
      %s15 = sphi 0, %s19
      %p16 = scmp.ge.s32.totalorder %s15, 4
      %s25 = sphi 0, %s27
      %s28 = sphi 0, %s25
      %s29 = sphi 0, %s28
      %s45 = sphi 0, %s29
      %s49 = sphi 0, %s49
      %s51 = sphi 0, %s49
      %s52 = sphi 0, %s51
      %s66 = sphi 0, %s52
      %s70 = sphi 0, %s70
      %s72 = sphi 0, %s70
      %s73 = sphi 0, %s72
      %s87 = sphi 0, %s73
      %s93 = sphi 0, %s95
      %s96 = sphi 0, %s93
      %s97 = sphi 0, %s96
      %s113 = sphi 0, %s97
    $region4: #{tpu_custom_call.1} parent=1 // loop_header_branch
      %18 = sbr.rel (%p16) target = $region8
    $region5: #{tpu_custom_call.1} parent=1 // loop_body
      %s20 = ssub.s32 %s15, 1
      %s21 = ssub.s32 %s15, 2
      %s22 = sadd.s32 %s15, 1
      %s23 = ssub.s32 %s15, %s22
      %p24 = scmp.eq.s32.totalorder %s23, 0
      %s26 = sadd.s32 %s25, 1
      %s27 = scalar_select %p24, %s25, %s26
      %p30 = pneg %p24
      %p31 = scmp.eq.s32.totalorder %s15, 1
      %p32 = por %p30, %p31
      %p33 = scmp.ne.s32.totalorder %s25, %s28
      %p34 = scmp.eq.s32.totalorder %s15, 0
      %p35 = por %p33, %p34
      %p36 = scmp.ne.s32.totalorder %s25, %s28
      %p37 = scmp.eq.s32.totalorder %s20, 1
      %p38 = por %p36, %p37
      %p39 = scmp.ne.s32.totalorder %s28, %s29
      %p40 = scmp.eq.s32.totalorder %s20, 0
      %p41 = por %p39, %p40
      %p42 = scmp.ne.s32.totalorder %s28, %s29
      %p43 = scmp.eq.s32.totalorder %s21, 1
      %p44 = por %p42, %p43
      %p46 = scmp.ne.s32.totalorder %s29, %s45
      %p47 = scmp.eq.s32.totalorder %s21, 0
      %p48 = por %p46, %p47
      %s50 = sadd.s32 %s49, 1
      %p53 = scmp.eq.s32.totalorder %s15, 1
      %p54 = scmp.ne.s32.totalorder %s49, %s51
      %p55 = scmp.eq.s32.totalorder %s15, 0
      %p56 = por %p54, %p55
      %p57 = scmp.ne.s32.totalorder %s49, %s51
      %p58 = scmp.eq.s32.totalorder %s20, 1
      %p59 = por %p57, %p58
      %p60 = scmp.ne.s32.totalorder %s51, %s52
      %p61 = scmp.eq.s32.totalorder %s20, 0
      %p62 = por %p60, %p61
      %p63 = scmp.ne.s32.totalorder %s51, %s52
      %p64 = scmp.eq.s32.totalorder %s21, 1
      %p65 = por %p63, %p64
      %p67 = scmp.ne.s32.totalorder %s52, %s66
      %p68 = scmp.eq.s32.totalorder %s21, 0
      %p69 = por %p67, %p68
      %s71 = sadd.s32 %s70, 1
      %p74 = scmp.eq.s32.totalorder %s15, 1
      %p75 = scmp.ne.s32.totalorder %s70, %s72
      %p76 = scmp.eq.s32.totalorder %s15, 0
      %p77 = por %p75, %p76
      %p78 = scmp.ne.s32.totalorder %s70, %s72
      %p79 = scmp.eq.s32.totalorder %s20, 1
      %p80 = por %p78, %p79
      %p81 = scmp.ne.s32.totalorder %s72, %s73
      %p82 = scmp.eq.s32.totalorder %s20, 0
      %p83 = por %p81, %p82
      %p84 = scmp.ne.s32.totalorder %s72, %s73
      %p85 = scmp.eq.s32.totalorder %s21, 1
      %p86 = por %p84, %p85
      %p88 = scmp.ne.s32.totalorder %s73, %s87
      %p89 = scmp.eq.s32.totalorder %s21, 0
      %p90 = por %p88, %p89
      %s91 = ssub.s32 %s15, %s22
      %p92 = scmp.eq.s32.totalorder %s91, 0
      %s94 = sadd.s32 %s93, 1
      %s95 = scalar_select %p92, %s93, %s94
      %p98 = pneg %p92
      %p99 = scmp.eq.s32.totalorder %s15, 1
      %p100 = por %p98, %p99
      %p101 = scmp.ne.s32.totalorder %s93, %s96
      %p102 = scmp.eq.s32.totalorder %s15, 0
      %p103 = por %p101, %p102
      %p104 = scmp.ne.s32.totalorder %s93, %s96
      %p105 = scmp.eq.s32.totalorder %s20, 1
      %p106 = por %p104, %p105
      %p107 = scmp.ne.s32.totalorder %s96, %s97
      %p108 = scmp.eq.s32.totalorder %s20, 0
      %p109 = por %p107, %p108
      %p110 = scmp.ne.s32.totalorder %s96, %s97
      %p111 = scmp.eq.s32.totalorder %s21, 1
      %p112 = por %p110, %p111
      %p114 = scmp.ne.s32.totalorder %s97, %s113
      %p115 = scmp.eq.s32.totalorder %s21, 0
      %p116 = por %p114, %p115
      %p117 = scmp.le.s32.totalorder 1, %s15
      %p118 = scmp.lt.s32.totalorder %s15, 3
      %p119 = pnand %p117, %p118
      %p120 = pneg %p119
      // Predicated region
      $region9: #{tpu_custom_call.1} parent=5 // pred_check
        _
      $region10: #{tpu_custom_call.1} parent=5 // pred_check_branch
        %122 = sbr.rel (%p119) target = $region12
      $region11: #{tpu_custom_call.1} parent=5 // pred_region
        %s123 = ssub.s32 %s15, 1
        // Predicated region
        $region13: #{tpu_custom_call.1} parent=11 // pred_check
          %p124 = pneg %p62
        $region14: #{tpu_custom_call.1} parent=11 // pred_check_branch
          %126 = sbr.rel (%p124) target = $region16
        $region15: #{tpu_custom_call.1} parent=11 // pred_region
          _
        $region16: #{tpu_custom_call.1} parent=11 // pred_fallthru
          _
        // Predicated region
        $region17: #{tpu_custom_call.1} parent=11 // pred_check
          %p127 = pneg %p83
        $region18: #{tpu_custom_call.1} parent=11 // pred_check_branch
          %129 = sbr.rel (%p127) target = $region20
        $region19: #{tpu_custom_call.1} parent=11 // pred_region
          _
        $region20: #{tpu_custom_call.1} parent=11 // pred_fallthru
          _
      $region12: #{tpu_custom_call.1} parent=5 // pred_fallthru
        _
      %p130 = scmp.lt.s32.totalorder %s15, 2
      // Predicated region
      $region21: #{tpu_custom_call.1} parent=5 // pred_check
        %p131 = pneg %p130
      $region22: #{tpu_custom_call.1} parent=5 // pred_check_branch
        %133 = sbr.rel (%p131) target = $region24
      $region23: #{tpu_custom_call.1} parent=5 // pred_region
        // Predicated region
        $region25: #{tpu_custom_call.1} parent=23 // pred_check
          %p134 = pneg %p35
        $region26: #{tpu_custom_call.1} parent=23 // pred_check_branch
          %136 = sbr.rel (%p134) target = $region28
        $region27: #{tpu_custom_call.1} parent=23 // pred_region
          %s137 = sand.u32 %s25, 1
          %s138 = scalar_lea.sflag [#allocation3], %s137
          %s139 = sand.u32 %s25, 1
          %s140 = smul.addr %s139, 512
          %s141 = scalar_lea.vmem [#allocation2], %s140
          %s142 = smul.u32 32, %s15
          %s144 = ssub.s32 8192, 8192
          %145 = vsyncadd %s138, %s144
          %s146 = smul.addr %s142, 2
          %s147 = smul.addr %s146, 128
          %s148 = scalar_lea.hbm %s0, %s147
          %s149 = sshll.u32 %s141, 4
          %s150 = int_to_ptr.vmem [resolvable:$true] %s149
          %155 = dma.hbm_to_vmem [thread:$0]  %s148, 8192, %s150, %s138, 256, 256, 16
        $region28: #{tpu_custom_call.1} parent=23 // pred_fallthru
          _
      $region24: #{tpu_custom_call.1} parent=5 // pred_fallthru
        _
      %p156 = scmp.le.s32.totalorder 1, %s15
      %p157 = scmp.lt.s32.totalorder %s15, 3
      %p158 = pnand %p156, %p157
      %p159 = pneg %p158
      // Predicated region
      $region29: #{tpu_custom_call.1} parent=5 // pred_check
        _
      $region30: #{tpu_custom_call.1} parent=5 // pred_check_branch
        %161 = sbr.rel (%p158) target = $region32
      $region31: #{tpu_custom_call.1} parent=5 // pred_region
        %s162 = ssub.s32 %s15, 1
        %s163 = sand.u32 %s28, 1
        %s164 = scalar_lea.sflag [#allocation3], %s163
        %s165 = sand.u32 %s28, 1
        %s166 = smul.addr %s165, 512
        %s167 = scalar_lea.vmem [#allocation2], %s166
        // Predicated region
        $region33: #{tpu_custom_call.1} parent=31 // pred_check
          %p168 = pneg %p41
        $region34: #{tpu_custom_call.1} parent=31 // pred_check_branch
          %170 = sbr.rel (%p168) target = $region36
        $region35: #{tpu_custom_call.1} parent=31 // pred_region
          %171 = dma.done %s164, 8192
        $region36: #{tpu_custom_call.1} parent=31 // pred_fallthru
          _
        %s172 = sand.u32 %s28, 1
        %s173 = scalar_lea.sflag [#allocation3], %s172
        %s174 = sand.u32 %s28, 1
        %s175 = smul.addr %s174, 512
        %s176 = scalar_lea.vmem [#allocation2], %s175
        %p177 = pneg %p41
        %p178 = pneg %p38
        %p179 = pneg %p62
        %p180 = pneg %p59
        %p181 = pneg %p83
        %p182 = pneg %p80
        %p183 = pneg %p109
        %p184 = pneg %p106
        %s185 = sand.u32 %s96, 1
        %s186 = scalar_lea.sflag [#allocation4], %s185
        %s187 = sand.u32 %s96, 1
        %s188 = smul.addr %s187, 256
        %s189 = scalar_lea.vmem [#allocation5], %s188
        %s190 = smul.u32 32, %s20
        %s191 = smul.u32 32, %s20
        %v192 = vld [vmem:[%s167] sm:$0xff]
        %v193 = vld [vmem:[%s167 + $0x8] sm:$0xff]
        %v194 = vld [vmem:[%s167 + $0x10] sm:$0xff]
        %v195 = vld [vmem:[%s167 + $0x18] sm:$0xff]
        %v196 = vld [vmem:[%s167 + $0x20] sm:$0xff]
        %v197 = vld [vmem:[%s167 + $0x28] sm:$0xff]
        %v198 = vld [vmem:[%s167 + $0x30] sm:$0xff]
        %v199 = vld [vmem:[%s167 + $0x38] sm:$0xff]
        %v200 = vld [vmem:[%s167 + $0x40] sm:$0xff]
        %v201 = vld [vmem:[%s167 + $0x48] sm:$0xff]
        %v202 = vld [vmem:[%s167 + $0x50] sm:$0xff]
        %v203 = vld [vmem:[%s167 + $0x58] sm:$0xff]
        %v204 = vld [vmem:[%s167 + $0x60] sm:$0xff]
        %v205 = vld [vmem:[%s167 + $0x68] sm:$0xff]
        %v206 = vld [vmem:[%s167 + $0x70] sm:$0xff]
        %v207 = vld [vmem:[%s167 + $0x78] sm:$0xff]
        %v208 = vld [vmem:[%s167 + $0x80] sm:$0xff]
        %v209 = vld [vmem:[%s167 + $0x88] sm:$0xff]
        %v210 = vld [vmem:[%s167 + $0x90] sm:$0xff]
        %v211 = vld [vmem:[%s167 + $0x98] sm:$0xff]
        %v212 = vld [vmem:[%s167 + $0xa0] sm:$0xff]
        %v213 = vld [vmem:[%s167 + $0xa8] sm:$0xff]
        %v214 = vld [vmem:[%s167 + $0xb0] sm:$0xff]
        %v215 = vld [vmem:[%s167 + $0xb8] sm:$0xff]
        %v216 = vld [vmem:[%s167 + $0xc0] sm:$0xff]
        %v217 = vld [vmem:[%s167 + $0xc8] sm:$0xff]
        %v218 = vld [vmem:[%s167 + $0xd0] sm:$0xff]
        %v219 = vld [vmem:[%s167 + $0xd8] sm:$0xff]
        %v220 = vld [vmem:[%s167 + $0xe0] sm:$0xff]
        %v221 = vld [vmem:[%s167 + $0xe8] sm:$0xff]
        %v222 = vld [vmem:[%s167 + $0xf0] sm:$0xff]
        %v223 = vld [vmem:[%s167 + $0xf8] sm:$0xff]
        %v224 = vld [vmem:[%s167 + $0x100] sm:$0xff]
        %v225 = vld [vmem:[%s167 + $0x108] sm:$0xff]
        %v226 = vld [vmem:[%s167 + $0x110] sm:$0xff]
        %v227 = vld [vmem:[%s167 + $0x118] sm:$0xff]
        %v228 = vld [vmem:[%s167 + $0x120] sm:$0xff]
        %v229 = vld [vmem:[%s167 + $0x128] sm:$0xff]
        %v230 = vld [vmem:[%s167 + $0x130] sm:$0xff]
        %v231 = vld [vmem:[%s167 + $0x138] sm:$0xff]
        %v232 = vld [vmem:[%s167 + $0x140] sm:$0xff]
        %v233 = vld [vmem:[%s167 + $0x148] sm:$0xff]
        %v234 = vld [vmem:[%s167 + $0x150] sm:$0xff]
        %v235 = vld [vmem:[%s167 + $0x158] sm:$0xff]
        %v236 = vld [vmem:[%s167 + $0x160] sm:$0xff]
        %v237 = vld [vmem:[%s167 + $0x168] sm:$0xff]
        %v238 = vld [vmem:[%s167 + $0x170] sm:$0xff]
        %v239 = vld [vmem:[%s167 + $0x178] sm:$0xff]
        %v240 = vld [vmem:[%s167 + $0x180] sm:$0xff]
        %v241 = vld [vmem:[%s167 + $0x188] sm:$0xff]
        %v242 = vld [vmem:[%s167 + $0x190] sm:$0xff]
        %v243 = vld [vmem:[%s167 + $0x198] sm:$0xff]
        %v244 = vld [vmem:[%s167 + $0x1a0] sm:$0xff]
        %v245 = vld [vmem:[%s167 + $0x1a8] sm:$0xff]
        %v246 = vld [vmem:[%s167 + $0x1b0] sm:$0xff]
        %v247 = vld [vmem:[%s167 + $0x1b8] sm:$0xff]
        %v248 = vld [vmem:[%s167 + $0x1c0] sm:$0xff]
        %v249 = vld [vmem:[%s167 + $0x1c8] sm:$0xff]
        %v250 = vld [vmem:[%s167 + $0x1d0] sm:$0xff]
        %v251 = vld [vmem:[%s167 + $0x1d8] sm:$0xff]
        %v252 = vld [vmem:[%s167 + $0x1e0] sm:$0xff]
        %v253 = vld [vmem:[%s167 + $0x1e8] sm:$0xff]
        %v254 = vld [vmem:[%s167 + $0x1f0] sm:$0xff]
        %v255 = vld [vmem:[%s167 + $0x1f8] sm:$0xff]
        %v256 = vadd.f32 %v192, %v193
        %257 = vadd.xlane.f32.xlu0 %v256
        %v258 = vpop.xlane.xlu0 %257
        %v259 = vadd.f32 %v194, %v195
        %260 = vadd.xlane.f32.xlu0 %v259
        %v261 = vpop.xlane.xlu0 %260
        %v262 = vadd.f32 %v196, %v197
        %263 = vadd.xlane.f32.xlu0 %v262
        %v264 = vpop.xlane.xlu0 %263
        %v265 = vadd.f32 %v198, %v199
        %266 = vadd.xlane.f32.xlu0 %v265
        %v267 = vpop.xlane.xlu0 %266
        %v268 = vadd.f32 %v200, %v201
        %269 = vadd.xlane.f32.xlu0 %v268
        %v270 = vpop.xlane.xlu0 %269
        %v271 = vadd.f32 %v202, %v203
        %272 = vadd.xlane.f32.xlu0 %v271
        %v273 = vpop.xlane.xlu0 %272
        %v274 = vadd.f32 %v204, %v205
        %275 = vadd.xlane.f32.xlu0 %v274
        %v276 = vpop.xlane.xlu0 %275
        %v277 = vadd.f32 %v206, %v207
        %278 = vadd.xlane.f32.xlu0 %v277
        %v279 = vpop.xlane.xlu0 %278
        %v280 = vadd.f32 %v208, %v209
        %281 = vadd.xlane.f32.xlu0 %v280
        %v282 = vpop.xlane.xlu0 %281
        %v283 = vadd.f32 %v210, %v211
        %284 = vadd.xlane.f32.xlu0 %v283
        %v285 = vpop.xlane.xlu0 %284
        %v286 = vadd.f32 %v212, %v213
        %287 = vadd.xlane.f32.xlu0 %v286
        %v288 = vpop.xlane.xlu0 %287
        %v289 = vadd.f32 %v214, %v215
        %290 = vadd.xlane.f32.xlu0 %v289
        %v291 = vpop.xlane.xlu0 %290
        %v292 = vadd.f32 %v216, %v217
        %293 = vadd.xlane.f32.xlu0 %v292
        %v294 = vpop.xlane.xlu0 %293
        %v295 = vadd.f32 %v218, %v219
        %296 = vadd.xlane.f32.xlu0 %v295
        %v297 = vpop.xlane.xlu0 %296
        %v298 = vadd.f32 %v220, %v221
        %299 = vadd.xlane.f32.xlu0 %v298
        %v300 = vpop.xlane.xlu0 %299
        %v301 = vadd.f32 %v222, %v223
        %302 = vadd.xlane.f32.xlu0 %v301
        %v303 = vpop.xlane.xlu0 %302
        %v304 = vadd.f32 %v224, %v225
        %305 = vadd.xlane.f32.xlu0 %v304
        %v306 = vpop.xlane.xlu0 %305
        %v307 = vadd.f32 %v226, %v227
        %308 = vadd.xlane.f32.xlu0 %v307
        %v309 = vpop.xlane.xlu0 %308
        %v310 = vadd.f32 %v228, %v229
        %311 = vadd.xlane.f32.xlu0 %v310
        %v312 = vpop.xlane.xlu0 %311
        %v313 = vadd.f32 %v230, %v231
        %314 = vadd.xlane.f32.xlu0 %v313
        %v315 = vpop.xlane.xlu0 %314
        %v316 = vadd.f32 %v232, %v233
        %317 = vadd.xlane.f32.xlu0 %v316
        %v318 = vpop.xlane.xlu0 %317
        %v319 = vadd.f32 %v234, %v235
        %320 = vadd.xlane.f32.xlu0 %v319
        %v321 = vpop.xlane.xlu0 %320
        %v322 = vadd.f32 %v236, %v237
        %323 = vadd.xlane.f32.xlu0 %v322
        %v324 = vpop.xlane.xlu0 %323
        %v325 = vadd.f32 %v238, %v239
        %326 = vadd.xlane.f32.xlu0 %v325
        %v327 = vpop.xlane.xlu0 %326
        %v328 = vadd.f32 %v240, %v241
        %329 = vadd.xlane.f32.xlu0 %v328
        %v330 = vpop.xlane.xlu0 %329
        %v331 = vadd.f32 %v242, %v243
        %332 = vadd.xlane.f32.xlu0 %v331
        %v333 = vpop.xlane.xlu0 %332
        %v334 = vadd.f32 %v244, %v245
        %335 = vadd.xlane.f32.xlu0 %v334
        %v336 = vpop.xlane.xlu0 %335
        %v337 = vadd.f32 %v246, %v247
        %338 = vadd.xlane.f32.xlu0 %v337
        %v339 = vpop.xlane.xlu0 %338
        %v340 = vadd.f32 %v248, %v249
        %341 = vadd.xlane.f32.xlu0 %v340
        %v342 = vpop.xlane.xlu0 %341
        %v343 = vadd.f32 %v250, %v251
        %344 = vadd.xlane.f32.xlu0 %v343
        %v345 = vpop.xlane.xlu0 %344
        %v346 = vadd.f32 %v252, %v253
        %347 = vadd.xlane.f32.xlu0 %v346
        %v348 = vpop.xlane.xlu0 %347
        %v349 = vadd.f32 %v254, %v255
        %350 = vadd.xlane.f32.xlu0 %v349
        %v351 = vpop.xlane.xlu0 %350
        %v352 = vrcp.pop 256.0
        %v353 = vmul.f32 %v258, %v352
        %v354 = vmul.f32 %v261, %v352
        %v355 = vmul.f32 %v264, %v352
        %v356 = vmul.f32 %v267, %v352
        %v357 = vmul.f32 %v270, %v352
        %v358 = vmul.f32 %v273, %v352
        %v359 = vmul.f32 %v276, %v352
        %v360 = vmul.f32 %v279, %v352
        %v361 = vmul.f32 %v282, %v352
        %v362 = vmul.f32 %v285, %v352
        %v363 = vmul.f32 %v288, %v352
        %v364 = vmul.f32 %v291, %v352
        %v365 = vmul.f32 %v294, %v352
        %v366 = vmul.f32 %v297, %v352
        %v367 = vmul.f32 %v300, %v352
        %v368 = vmul.f32 %v303, %v352
        %v369 = vmul.f32 %v306, %v352
        %v370 = vmul.f32 %v309, %v352
        %v371 = vmul.f32 %v312, %v352
        %v372 = vmul.f32 %v315, %v352
        %v373 = vmul.f32 %v318, %v352
        %v374 = vmul.f32 %v321, %v352
        %v375 = vmul.f32 %v324, %v352
        %v376 = vmul.f32 %v327, %v352
        %v377 = vmul.f32 %v330, %v352
        %v378 = vmul.f32 %v333, %v352
        %v379 = vmul.f32 %v336, %v352
        %v380 = vmul.f32 %v339, %v352
        %v381 = vmul.f32 %v342, %v352
        %v382 = vmul.f32 %v345, %v352
        %v383 = vmul.f32 %v348, %v352
        %v384 = vmul.f32 %v351, %v352
        %v385 = vsub.f32 %v192, %v353
        %v386 = vsub.f32 %v193, %v353
        %v387 = vsub.f32 %v194, %v354
        %v388 = vsub.f32 %v195, %v354
        %v389 = vsub.f32 %v196, %v355
        %v390 = vsub.f32 %v197, %v355
        %v391 = vsub.f32 %v198, %v356
        %v392 = vsub.f32 %v199, %v356
        %v393 = vsub.f32 %v200, %v357
        %v394 = vsub.f32 %v201, %v357
        %v395 = vsub.f32 %v202, %v358
        %v396 = vsub.f32 %v203, %v358
        %v397 = vsub.f32 %v204, %v359
        %v398 = vsub.f32 %v205, %v359
        %v399 = vsub.f32 %v206, %v360
        %v400 = vsub.f32 %v207, %v360
        %v401 = vsub.f32 %v208, %v361
        %v402 = vsub.f32 %v209, %v361
        %v403 = vsub.f32 %v210, %v362
        %v404 = vsub.f32 %v211, %v362
        %v405 = vsub.f32 %v212, %v363
        %v406 = vsub.f32 %v213, %v363
        %v407 = vsub.f32 %v214, %v364
        %v408 = vsub.f32 %v215, %v364
        %v409 = vsub.f32 %v216, %v365
        %v410 = vsub.f32 %v217, %v365
        %v411 = vsub.f32 %v218, %v366
        %v412 = vsub.f32 %v219, %v366
        %v413 = vsub.f32 %v220, %v367
        %v414 = vsub.f32 %v221, %v367
        %v415 = vsub.f32 %v222, %v368
        %v416 = vsub.f32 %v223, %v368
        %v417 = vsub.f32 %v224, %v369
        %v418 = vsub.f32 %v225, %v369
        %v419 = vsub.f32 %v226, %v370
        %v420 = vsub.f32 %v227, %v370
        %v421 = vsub.f32 %v228, %v371
        %v422 = vsub.f32 %v229, %v371
        %v423 = vsub.f32 %v230, %v372
        %v424 = vsub.f32 %v231, %v372
        %v425 = vsub.f32 %v232, %v373
        %v426 = vsub.f32 %v233, %v373
        %v427 = vsub.f32 %v234, %v374
        %v428 = vsub.f32 %v235, %v374
        %v429 = vsub.f32 %v236, %v375
        %v430 = vsub.f32 %v237, %v375
        %v431 = vsub.f32 %v238, %v376
        %v432 = vsub.f32 %v239, %v376
        %v433 = vsub.f32 %v240, %v377
        %v434 = vsub.f32 %v241, %v377
        %v435 = vsub.f32 %v242, %v378
        %v436 = vsub.f32 %v243, %v378
        %v437 = vsub.f32 %v244, %v379
        %v438 = vsub.f32 %v245, %v379
        %v439 = vsub.f32 %v246, %v380
        %v440 = vsub.f32 %v247, %v380
        %v441 = vsub.f32 %v248, %v381
        %v442 = vsub.f32 %v249, %v381
        %v443 = vsub.f32 %v250, %v382
        %v444 = vsub.f32 %v251, %v382
        %v445 = vsub.f32 %v252, %v383
        %v446 = vsub.f32 %v253, %v383
        %v447 = vsub.f32 %v254, %v384
        %v448 = vsub.f32 %v255, %v384
        %v449 = vmul.f32 %v385, %v385
        %v450 = vmul.f32 %v386, %v386
        %v451 = vmul.f32 %v387, %v387
        %v452 = vmul.f32 %v388, %v388
        %v453 = vmul.f32 %v389, %v389
        %v454 = vmul.f32 %v390, %v390
        %v455 = vmul.f32 %v391, %v391
        %v456 = vmul.f32 %v392, %v392
        %v457 = vmul.f32 %v393, %v393
        %v458 = vmul.f32 %v394, %v394
        %v459 = vmul.f32 %v395, %v395
        %v460 = vmul.f32 %v396, %v396
        %v461 = vmul.f32 %v397, %v397
        %v462 = vmul.f32 %v398, %v398
        %v463 = vmul.f32 %v399, %v399
        %v464 = vmul.f32 %v400, %v400
        %v465 = vmul.f32 %v401, %v401
        %v466 = vmul.f32 %v402, %v402
        %v467 = vmul.f32 %v403, %v403
        %v468 = vmul.f32 %v404, %v404
        %v469 = vmul.f32 %v405, %v405
        %v470 = vmul.f32 %v406, %v406
        %v471 = vmul.f32 %v407, %v407
        %v472 = vmul.f32 %v408, %v408
        %v473 = vmul.f32 %v409, %v409
        %v474 = vmul.f32 %v410, %v410
        %v475 = vmul.f32 %v411, %v411
        %v476 = vmul.f32 %v412, %v412
        %v477 = vmul.f32 %v413, %v413
        %v478 = vmul.f32 %v414, %v414
        %v479 = vmul.f32 %v415, %v415
        %v480 = vmul.f32 %v416, %v416
        %v481 = vmul.f32 %v417, %v417
        %v482 = vmul.f32 %v418, %v418
        %v483 = vmul.f32 %v419, %v419
        %v484 = vmul.f32 %v420, %v420
        %v485 = vmul.f32 %v421, %v421
        %v486 = vmul.f32 %v422, %v422
        %v487 = vmul.f32 %v423, %v423
        %v488 = vmul.f32 %v424, %v424
        %v489 = vmul.f32 %v425, %v425
        %v490 = vmul.f32 %v426, %v426
        %v491 = vmul.f32 %v427, %v427
        %v492 = vmul.f32 %v428, %v428
        %v493 = vmul.f32 %v429, %v429
        %v494 = vmul.f32 %v430, %v430
        %v495 = vmul.f32 %v431, %v431
        %v496 = vmul.f32 %v432, %v432
        %v497 = vmul.f32 %v433, %v433
        %v498 = vmul.f32 %v434, %v434
        %v499 = vmul.f32 %v435, %v435
        %v500 = vmul.f32 %v436, %v436
        %v501 = vmul.f32 %v437, %v437
        %v502 = vmul.f32 %v438, %v438
        %v503 = vmul.f32 %v439, %v439
        %v504 = vmul.f32 %v440, %v440
        %v505 = vmul.f32 %v441, %v441
        %v506 = vmul.f32 %v442, %v442
        %v507 = vmul.f32 %v443, %v443
        %v508 = vmul.f32 %v444, %v444
        %v509 = vmul.f32 %v445, %v445
        %v510 = vmul.f32 %v446, %v446
        %v511 = vmul.f32 %v447, %v447
        %v512 = vmul.f32 %v448, %v448
        %v513 = vadd.f32 %v449, %v450
        %514 = vadd.xlane.f32.xlu0 %v513
        %v515 = vpop.xlane.xlu0 %514
        %v516 = vadd.f32 %v451, %v452
        %517 = vadd.xlane.f32.xlu0 %v516
        %v518 = vpop.xlane.xlu0 %517
        %v519 = vadd.f32 %v453, %v454
        %520 = vadd.xlane.f32.xlu0 %v519
        %v521 = vpop.xlane.xlu0 %520
        %v522 = vadd.f32 %v455, %v456
        %523 = vadd.xlane.f32.xlu0 %v522
        %v524 = vpop.xlane.xlu0 %523
        %v525 = vadd.f32 %v457, %v458
        %526 = vadd.xlane.f32.xlu0 %v525
        %v527 = vpop.xlane.xlu0 %526
        %v528 = vadd.f32 %v459, %v460
        %529 = vadd.xlane.f32.xlu0 %v528
        %v530 = vpop.xlane.xlu0 %529
        %v531 = vadd.f32 %v461, %v462
        %532 = vadd.xlane.f32.xlu0 %v531
        %v533 = vpop.xlane.xlu0 %532
        %v534 = vadd.f32 %v463, %v464
        %535 = vadd.xlane.f32.xlu0 %v534
        %v536 = vpop.xlane.xlu0 %535
        %v537 = vadd.f32 %v465, %v466
        %538 = vadd.xlane.f32.xlu0 %v537
        %v539 = vpop.xlane.xlu0 %538
        %v540 = vadd.f32 %v467, %v468
        %541 = vadd.xlane.f32.xlu0 %v540
        %v542 = vpop.xlane.xlu0 %541
        %v543 = vadd.f32 %v469, %v470
        %544 = vadd.xlane.f32.xlu0 %v543
        %v545 = vpop.xlane.xlu0 %544
        %v546 = vadd.f32 %v471, %v472
        %547 = vadd.xlane.f32.xlu0 %v546
        %v548 = vpop.xlane.xlu0 %547
        %v549 = vadd.f32 %v473, %v474
        %550 = vadd.xlane.f32.xlu0 %v549
        %v551 = vpop.xlane.xlu0 %550
        %v552 = vadd.f32 %v475, %v476
        %553 = vadd.xlane.f32.xlu0 %v552
        %v554 = vpop.xlane.xlu0 %553
        %v555 = vadd.f32 %v477, %v478
        %556 = vadd.xlane.f32.xlu0 %v555
        %v557 = vpop.xlane.xlu0 %556
        %v558 = vadd.f32 %v479, %v480
        %559 = vadd.xlane.f32.xlu0 %v558
        %v560 = vpop.xlane.xlu0 %559
        %v561 = vadd.f32 %v481, %v482
        %562 = vadd.xlane.f32.xlu0 %v561
        %v563 = vpop.xlane.xlu0 %562
        %v564 = vadd.f32 %v483, %v484
        %565 = vadd.xlane.f32.xlu0 %v564
        %v566 = vpop.xlane.xlu0 %565
        %v567 = vadd.f32 %v485, %v486
        %568 = vadd.xlane.f32.xlu0 %v567
        %v569 = vpop.xlane.xlu0 %568
        %v570 = vadd.f32 %v487, %v488
        %571 = vadd.xlane.f32.xlu0 %v570
        %v572 = vpop.xlane.xlu0 %571
        %v573 = vadd.f32 %v489, %v490
        %574 = vadd.xlane.f32.xlu0 %v573
        %v575 = vpop.xlane.xlu0 %574
        %v576 = vadd.f32 %v491, %v492
        %577 = vadd.xlane.f32.xlu0 %v576
        %v578 = vpop.xlane.xlu0 %577
        %v579 = vadd.f32 %v493, %v494
        %580 = vadd.xlane.f32.xlu0 %v579
        %v581 = vpop.xlane.xlu0 %580
        %v582 = vadd.f32 %v495, %v496
        %583 = vadd.xlane.f32.xlu0 %v582
        %v584 = vpop.xlane.xlu0 %583
        %v585 = vadd.f32 %v497, %v498
        %586 = vadd.xlane.f32.xlu0 %v585
        %v587 = vpop.xlane.xlu0 %586
        %v588 = vadd.f32 %v499, %v500
        %589 = vadd.xlane.f32.xlu0 %v588
        %v590 = vpop.xlane.xlu0 %589
        %v591 = vadd.f32 %v501, %v502
        %592 = vadd.xlane.f32.xlu0 %v591
        %v593 = vpop.xlane.xlu0 %592
        %v594 = vadd.f32 %v503, %v504
        %595 = vadd.xlane.f32.xlu0 %v594
        %v596 = vpop.xlane.xlu0 %595
        %v597 = vadd.f32 %v505, %v506
        %598 = vadd.xlane.f32.xlu0 %v597
        %v599 = vpop.xlane.xlu0 %598
        %v600 = vadd.f32 %v507, %v508
        %601 = vadd.xlane.f32.xlu0 %v600
        %v602 = vpop.xlane.xlu0 %601
        %v603 = vadd.f32 %v509, %v510
        %604 = vadd.xlane.f32.xlu0 %v603
        %v605 = vpop.xlane.xlu0 %604
        %v606 = vadd.f32 %v511, %v512
        %607 = vadd.xlane.f32.xlu0 %v606
        %v608 = vpop.xlane.xlu0 %607
        %v609 = vmul.f32 %v515, %v352
        %v610 = vmul.f32 %v518, %v352
        %v611 = vmul.f32 %v521, %v352
        %v612 = vmul.f32 %v524, %v352
        %v613 = vmul.f32 %v527, %v352
        %v614 = vmul.f32 %v530, %v352
        %v615 = vmul.f32 %v533, %v352
        %v616 = vmul.f32 %v536, %v352
        %v617 = vmul.f32 %v539, %v352
        %v618 = vmul.f32 %v542, %v352
        %v619 = vmul.f32 %v545, %v352
        %v620 = vmul.f32 %v548, %v352
        %v621 = vmul.f32 %v551, %v352
        %v622 = vmul.f32 %v554, %v352
        %v623 = vmul.f32 %v557, %v352
        %v624 = vmul.f32 %v560, %v352
        %v625 = vmul.f32 %v563, %v352
        %v626 = vmul.f32 %v566, %v352
        %v627 = vmul.f32 %v569, %v352
        %v628 = vmul.f32 %v572, %v352
        %v629 = vmul.f32 %v575, %v352
        %v630 = vmul.f32 %v578, %v352
        %v631 = vmul.f32 %v581, %v352
        %v632 = vmul.f32 %v584, %v352
        %v633 = vmul.f32 %v587, %v352
        %v634 = vmul.f32 %v590, %v352
        %v635 = vmul.f32 %v593, %v352
        %v636 = vmul.f32 %v596, %v352
        %v637 = vmul.f32 %v599, %v352
        %v638 = vmul.f32 %v602, %v352
        %v639 = vmul.f32 %v605, %v352
        %v640 = vmul.f32 %v608, %v352
        %v641 = vadd.f32 %v609, 1e-05
        %v642 = vadd.f32 %v610, 1e-05
        %v643 = vadd.f32 %v611, 1e-05
        %v644 = vadd.f32 %v612, 1e-05
        %v645 = vadd.f32 %v613, 1e-05
        %v646 = vadd.f32 %v614, 1e-05
        %v647 = vadd.f32 %v615, 1e-05
        %v648 = vadd.f32 %v616, 1e-05
        %v649 = vadd.f32 %v617, 1e-05
        %v650 = vadd.f32 %v618, 1e-05
        %v651 = vadd.f32 %v619, 1e-05
        %v652 = vadd.f32 %v620, 1e-05
        %v653 = vadd.f32 %v621, 1e-05
        %v654 = vadd.f32 %v622, 1e-05
        %v655 = vadd.f32 %v623, 1e-05
        %v656 = vadd.f32 %v624, 1e-05
        %v657 = vadd.f32 %v625, 1e-05
        %v658 = vadd.f32 %v626, 1e-05
        %v659 = vadd.f32 %v627, 1e-05
        %v660 = vadd.f32 %v628, 1e-05
        %v661 = vadd.f32 %v629, 1e-05
        %v662 = vadd.f32 %v630, 1e-05
        %v663 = vadd.f32 %v631, 1e-05
        %v664 = vadd.f32 %v632, 1e-05
        %v665 = vadd.f32 %v633, 1e-05
        %v666 = vadd.f32 %v634, 1e-05
        %v667 = vadd.f32 %v635, 1e-05
        %v668 = vadd.f32 %v636, 1e-05
        %v669 = vadd.f32 %v637, 1e-05
        %v670 = vadd.f32 %v638, 1e-05
        %v671 = vadd.f32 %v639, 1e-05
        %v672 = vadd.f32 %v640, 1e-05
        %v673 = vrsqrt.pop %v641
        %v674 = vrsqrt.pop %v642
        %v675 = vrsqrt.pop %v643
        %v676 = vrsqrt.pop %v644
        %v677 = vrsqrt.pop %v645
        %v678 = vrsqrt.pop %v646
        %v679 = vrsqrt.pop %v647
        %v680 = vrsqrt.pop %v648
        %v681 = vrsqrt.pop %v649
        %v682 = vrsqrt.pop %v650
        %v683 = vrsqrt.pop %v651
        %v684 = vrsqrt.pop %v652
        %v685 = vrsqrt.pop %v653
        %v686 = vrsqrt.pop %v654
        %v687 = vrsqrt.pop %v655
        %v688 = vrsqrt.pop %v656
        %v689 = vrsqrt.pop %v657
        %v690 = vrsqrt.pop %v658
        %v691 = vrsqrt.pop %v659
        %v692 = vrsqrt.pop %v660
        %v693 = vrsqrt.pop %v661
        %v694 = vrsqrt.pop %v662
        %v695 = vrsqrt.pop %v663
        %v696 = vrsqrt.pop %v664
        %v697 = vrsqrt.pop %v665
        %v698 = vrsqrt.pop %v666
        %v699 = vrsqrt.pop %v667
        %v700 = vrsqrt.pop %v668
        %v701 = vrsqrt.pop %v669
        %v702 = vrsqrt.pop %v670
        %v703 = vrsqrt.pop %v671
        %v704 = vrsqrt.pop %v672
        %v705 = vmul.f32 %v385, %v673
        %v706 = vmul.f32 %v386, %v673
        %v707 = vmul.f32 %v387, %v674
        %v708 = vmul.f32 %v388, %v674
        %v709 = vmul.f32 %v389, %v675
        %v710 = vmul.f32 %v390, %v675
        %v711 = vmul.f32 %v391, %v676
        %v712 = vmul.f32 %v392, %v676
        %v713 = vmul.f32 %v393, %v677
        %v714 = vmul.f32 %v394, %v677
        %v715 = vmul.f32 %v395, %v678
        %v716 = vmul.f32 %v396, %v678
        %v717 = vmul.f32 %v397, %v679
        %v718 = vmul.f32 %v398, %v679
        %v719 = vmul.f32 %v399, %v680
        %v720 = vmul.f32 %v400, %v680
        %v721 = vmul.f32 %v401, %v681
        %v722 = vmul.f32 %v402, %v681
        %v723 = vmul.f32 %v403, %v682
        %v724 = vmul.f32 %v404, %v682
        %v725 = vmul.f32 %v405, %v683
        %v726 = vmul.f32 %v406, %v683
        %v727 = vmul.f32 %v407, %v684
        %v728 = vmul.f32 %v408, %v684
        %v729 = vmul.f32 %v409, %v685
        %v730 = vmul.f32 %v410, %v685
        %v731 = vmul.f32 %v411, %v686
        %v732 = vmul.f32 %v412, %v686
        %v733 = vmul.f32 %v413, %v687
        %v734 = vmul.f32 %v414, %v687
        %v735 = vmul.f32 %v415, %v688
        %v736 = vmul.f32 %v416, %v688
        %v737 = vmul.f32 %v417, %v689
        %v738 = vmul.f32 %v418, %v689
        %v739 = vmul.f32 %v419, %v690
        %v740 = vmul.f32 %v420, %v690
        %v741 = vmul.f32 %v421, %v691
        %v742 = vmul.f32 %v422, %v691
        %v743 = vmul.f32 %v423, %v692
        %v744 = vmul.f32 %v424, %v692
        %v745 = vmul.f32 %v425, %v693
        %v746 = vmul.f32 %v426, %v693
        %v747 = vmul.f32 %v427, %v694
        %v748 = vmul.f32 %v428, %v694
        %v749 = vmul.f32 %v429, %v695
        %v750 = vmul.f32 %v430, %v695
        %v751 = vmul.f32 %v431, %v696
        %v752 = vmul.f32 %v432, %v696
        %v753 = vmul.f32 %v433, %v697
        %v754 = vmul.f32 %v434, %v697
        %v755 = vmul.f32 %v435, %v698
        %v756 = vmul.f32 %v436, %v698
        %v757 = vmul.f32 %v437, %v699
        %v758 = vmul.f32 %v438, %v699
        %v759 = vmul.f32 %v439, %v700
        %v760 = vmul.f32 %v440, %v700
        %v761 = vmul.f32 %v441, %v701
        %v762 = vmul.f32 %v442, %v701
        %v763 = vmul.f32 %v443, %v702
        %v764 = vmul.f32 %v444, %v702
        %v765 = vmul.f32 %v445, %v703
        %v766 = vmul.f32 %v446, %v703
        %v767 = vmul.f32 %v447, %v704
        %v768 = vmul.f32 %v448, %v704
        %v769 = vld [vmem:[%s1] sm:$0x3]
        %v771 = vlaneseq
        %v772 = vshrl.u32 %v771, 7
        %v773 = vsub.s32 0, %v772
        %v774 = vrot.slane %v769, %v773
        %v775 = vlaneseq
        %v776 = vshrl.u32 %v775, 7
        %v777 = vsub.s32 1, %v776
        %v778 = vrot.slane %v769, %v777
        %v781 = vmul.f32 %v705, %v774
        %v782 = vmul.f32 %v706, %v778
        %v783 = vmul.f32 %v707, %v774
        %v784 = vmul.f32 %v708, %v778
        %v785 = vmul.f32 %v709, %v774
        %v786 = vmul.f32 %v710, %v778
        %v787 = vmul.f32 %v711, %v774
        %v788 = vmul.f32 %v712, %v778
        %v789 = vmul.f32 %v713, %v774
        %v790 = vmul.f32 %v714, %v778
        %v791 = vmul.f32 %v715, %v774
        %v792 = vmul.f32 %v716, %v778
        %v793 = vmul.f32 %v717, %v774
        %v794 = vmul.f32 %v718, %v778
        %v795 = vmul.f32 %v719, %v774
        %v796 = vmul.f32 %v720, %v778
        %v797 = vmul.f32 %v721, %v774
        %v798 = vmul.f32 %v722, %v778
        %v799 = vmul.f32 %v723, %v774
        %v800 = vmul.f32 %v724, %v778
        %v801 = vmul.f32 %v725, %v774
        %v802 = vmul.f32 %v726, %v778
        %v803 = vmul.f32 %v727, %v774
        %v804 = vmul.f32 %v728, %v778
        %v805 = vmul.f32 %v729, %v774
        %v806 = vmul.f32 %v730, %v778
        %v807 = vmul.f32 %v731, %v774
        %v808 = vmul.f32 %v732, %v778
        %v809 = vmul.f32 %v733, %v774
        %v810 = vmul.f32 %v734, %v778
        %v811 = vmul.f32 %v735, %v774
        %v812 = vmul.f32 %v736, %v778
        %v813 = vmul.f32 %v737, %v774
        %v814 = vmul.f32 %v738, %v778
        %v815 = vmul.f32 %v739, %v774
        %v816 = vmul.f32 %v740, %v778
        %v817 = vmul.f32 %v741, %v774
        %v818 = vmul.f32 %v742, %v778
        %v819 = vmul.f32 %v743, %v774
        %v820 = vmul.f32 %v744, %v778
        %v821 = vmul.f32 %v745, %v774
        %v822 = vmul.f32 %v746, %v778
        %v823 = vmul.f32 %v747, %v774
        %v824 = vmul.f32 %v748, %v778
        %v825 = vmul.f32 %v749, %v774
        %v826 = vmul.f32 %v750, %v778
        %v827 = vmul.f32 %v751, %v774
        %v828 = vmul.f32 %v752, %v778
        %v829 = vmul.f32 %v753, %v774
        %v830 = vmul.f32 %v754, %v778
        %v831 = vmul.f32 %v755, %v774
        %v832 = vmul.f32 %v756, %v778
        %v833 = vmul.f32 %v757, %v774
        %v834 = vmul.f32 %v758, %v778
        %v835 = vmul.f32 %v759, %v774
        %v836 = vmul.f32 %v760, %v778
        %v837 = vmul.f32 %v761, %v774
        %v838 = vmul.f32 %v762, %v778
        %v839 = vmul.f32 %v763, %v774
        %v840 = vmul.f32 %v764, %v778
        %v841 = vmul.f32 %v765, %v774
        %v842 = vmul.f32 %v766, %v778
        %v843 = vmul.f32 %v767, %v774
        %v844 = vmul.f32 %v768, %v778
        %v845 = vld [vmem:[%s2] sm:$0x3]
        %v847 = vlaneseq
        %v848 = vshrl.u32 %v847, 7
        %v849 = vsub.s32 0, %v848
        %v850 = vrot.slane %v845, %v849
        %v851 = vlaneseq
        %v852 = vshrl.u32 %v851, 7
        %v853 = vsub.s32 1, %v852
        %v854 = vrot.slane %v845, %v853
        %v857 = vadd.f32 %v781, %v850
        %v858 = vadd.f32 %v782, %v854
        %v859 = vadd.f32 %v783, %v850
        %v860 = vadd.f32 %v784, %v854
        %v861 = vadd.f32 %v785, %v850
        %v862 = vadd.f32 %v786, %v854
        %v863 = vadd.f32 %v787, %v850
        %v864 = vadd.f32 %v788, %v854
        %v865 = vadd.f32 %v789, %v850
        %v866 = vadd.f32 %v790, %v854
        %v867 = vadd.f32 %v791, %v850
        %v868 = vadd.f32 %v792, %v854
        %v869 = vadd.f32 %v793, %v850
        %v870 = vadd.f32 %v794, %v854
        %v871 = vadd.f32 %v795, %v850
        %v872 = vadd.f32 %v796, %v854
        %v873 = vadd.f32 %v797, %v850
        %v874 = vadd.f32 %v798, %v854
        %v875 = vadd.f32 %v799, %v850
        %v876 = vadd.f32 %v800, %v854
        %v877 = vadd.f32 %v801, %v850
        %v878 = vadd.f32 %v802, %v854
        %v879 = vadd.f32 %v803, %v850
        %v880 = vadd.f32 %v804, %v854
        %v881 = vadd.f32 %v805, %v850
        %v882 = vadd.f32 %v806, %v854
        %v883 = vadd.f32 %v807, %v850
        %v884 = vadd.f32 %v808, %v854
        %v885 = vadd.f32 %v809, %v850
        %v886 = vadd.f32 %v810, %v854
        %v887 = vadd.f32 %v811, %v850
        %v888 = vadd.f32 %v812, %v854
        %v889 = vadd.f32 %v813, %v850
        %v890 = vadd.f32 %v814, %v854
        %v891 = vadd.f32 %v815, %v850
        %v892 = vadd.f32 %v816, %v854
        %v893 = vadd.f32 %v817, %v850
        %v894 = vadd.f32 %v818, %v854
        %v895 = vadd.f32 %v819, %v850
        %v896 = vadd.f32 %v820, %v854
        %v897 = vadd.f32 %v821, %v850
        %v898 = vadd.f32 %v822, %v854
        %v899 = vadd.f32 %v823, %v850
        %v900 = vadd.f32 %v824, %v854
        %v901 = vadd.f32 %v825, %v850
        %v902 = vadd.f32 %v826, %v854
        %v903 = vadd.f32 %v827, %v850
        %v904 = vadd.f32 %v828, %v854
        %v905 = vadd.f32 %v829, %v850
        %v906 = vadd.f32 %v830, %v854
        %v907 = vadd.f32 %v831, %v850
        %v908 = vadd.f32 %v832, %v854
        %v909 = vadd.f32 %v833, %v850
        %v910 = vadd.f32 %v834, %v854
        %v911 = vadd.f32 %v835, %v850
        %v912 = vadd.f32 %v836, %v854
        %v913 = vadd.f32 %v837, %v850
        %v914 = vadd.f32 %v838, %v854
        %v915 = vadd.f32 %v839, %v850
        %v916 = vadd.f32 %v840, %v854
        %v917 = vadd.f32 %v841, %v850
        %v918 = vadd.f32 %v842, %v854
        %v919 = vadd.f32 %v843, %v850
        %v920 = vadd.f32 %v844, %v854
        %v921 = vpack.c.bf16 %v859, %v857
        %v922 = vpack.c.bf16 %v860, %v858
        %v923 = vpack.c.bf16 %v863, %v861
        %v924 = vpack.c.bf16 %v864, %v862
        %v925 = vpack.c.bf16 %v867, %v865
        %v926 = vpack.c.bf16 %v868, %v866
        %v927 = vpack.c.bf16 %v871, %v869
        %v928 = vpack.c.bf16 %v872, %v870
        %v929 = vpack.c.bf16 %v875, %v873
        %v930 = vpack.c.bf16 %v876, %v874
        %v931 = vpack.c.bf16 %v879, %v877
        %v932 = vpack.c.bf16 %v880, %v878
        %v933 = vpack.c.bf16 %v883, %v881
        %v934 = vpack.c.bf16 %v884, %v882
        %v935 = vpack.c.bf16 %v887, %v885
        %v936 = vpack.c.bf16 %v888, %v886
        %v937 = vpack.c.bf16 %v891, %v889
        %v938 = vpack.c.bf16 %v892, %v890
        %v939 = vpack.c.bf16 %v895, %v893
        %v940 = vpack.c.bf16 %v896, %v894
        %v941 = vpack.c.bf16 %v899, %v897
        %v942 = vpack.c.bf16 %v900, %v898
        %v943 = vpack.c.bf16 %v903, %v901
        %v944 = vpack.c.bf16 %v904, %v902
        %v945 = vpack.c.bf16 %v907, %v905
        %v946 = vpack.c.bf16 %v908, %v906
        %v947 = vpack.c.bf16 %v911, %v909
        %v948 = vpack.c.bf16 %v912, %v910
        %v949 = vpack.c.bf16 %v915, %v913
        %v950 = vpack.c.bf16 %v916, %v914
        %v951 = vpack.c.bf16 %v919, %v917
        %v952 = vpack.c.bf16 %v920, %v918
        %v985 = vunpack.c.l.b16 %v921
        %v986 = vunpack.c.l.b16 %v922
        %v987 = vunpack.c.h.b16 %v921
        %v988 = vunpack.c.h.b16 %v922
        %v989 = vunpack.c.l.b16 %v923
        %v990 = vunpack.c.l.b16 %v924
        %v991 = vunpack.c.h.b16 %v923
        %v992 = vunpack.c.h.b16 %v924
        %v993 = vunpack.c.l.b16 %v925
        %v994 = vunpack.c.l.b16 %v926
        %v995 = vunpack.c.h.b16 %v925
        %v996 = vunpack.c.h.b16 %v926
        %v997 = vunpack.c.l.b16 %v927
        %v998 = vunpack.c.l.b16 %v928
        %v999 = vunpack.c.h.b16 %v927
        %v1000 = vunpack.c.h.b16 %v928
        %v1001 = vunpack.c.l.b16 %v929
        %v1002 = vunpack.c.l.b16 %v930
        %v1003 = vunpack.c.h.b16 %v929
        %v1004 = vunpack.c.h.b16 %v930
        %v1005 = vunpack.c.l.b16 %v931
        %v1006 = vunpack.c.l.b16 %v932
        %v1007 = vunpack.c.h.b16 %v931
        %v1008 = vunpack.c.h.b16 %v932
        %v1009 = vunpack.c.l.b16 %v933
        %v1010 = vunpack.c.l.b16 %v934
        %v1011 = vunpack.c.h.b16 %v933
        %v1012 = vunpack.c.h.b16 %v934
        %v1013 = vunpack.c.l.b16 %v935
        %v1014 = vunpack.c.l.b16 %v936
        %v1015 = vunpack.c.h.b16 %v935
        %v1016 = vunpack.c.h.b16 %v936
        %v1017 = vunpack.c.l.b16 %v937
        %v1018 = vunpack.c.l.b16 %v938
        %v1019 = vunpack.c.h.b16 %v937
        %v1020 = vunpack.c.h.b16 %v938
        %v1021 = vunpack.c.l.b16 %v939
        %v1022 = vunpack.c.l.b16 %v940
        %v1023 = vunpack.c.h.b16 %v939
        %v1024 = vunpack.c.h.b16 %v940
        %v1025 = vunpack.c.l.b16 %v941
        %v1026 = vunpack.c.l.b16 %v942
        %v1027 = vunpack.c.h.b16 %v941
        %v1028 = vunpack.c.h.b16 %v942
        %v1029 = vunpack.c.l.b16 %v943
        %v1030 = vunpack.c.l.b16 %v944
        %v1031 = vunpack.c.h.b16 %v943
        %v1032 = vunpack.c.h.b16 %v944
        %v1033 = vunpack.c.l.b16 %v945
        %v1034 = vunpack.c.l.b16 %v946
        %v1035 = vunpack.c.h.b16 %v945
        %v1036 = vunpack.c.h.b16 %v946
        %v1037 = vunpack.c.l.b16 %v947
        %v1038 = vunpack.c.l.b16 %v948
        %v1039 = vunpack.c.h.b16 %v947
        %v1040 = vunpack.c.h.b16 %v948
        %v1041 = vunpack.c.l.b16 %v949
        %v1042 = vunpack.c.l.b16 %v950
        %v1043 = vunpack.c.h.b16 %v949
        %v1044 = vunpack.c.h.b16 %v950
        %v1045 = vunpack.c.l.b16 %v951
        %v1046 = vunpack.c.l.b16 %v952
        %v1047 = vunpack.c.h.b16 %v951
        %v1048 = vunpack.c.h.b16 %v952
        %v1049 = vpack.c.b16 %v986, %v985
        %v1050 = vpack.c.b16 %v988, %v987
        %v1051 = vpack.c.b16 %v990, %v989
        %v1052 = vpack.c.b16 %v992, %v991
        %v1053 = vpack.c.b16 %v994, %v993
        %v1054 = vpack.c.b16 %v996, %v995
        %v1055 = vpack.c.b16 %v998, %v997
        %v1056 = vpack.c.b16 %v1000, %v999
        %v1057 = vpack.c.b16 %v1002, %v1001
        %v1058 = vpack.c.b16 %v1004, %v1003
        %v1059 = vpack.c.b16 %v1006, %v1005
        %v1060 = vpack.c.b16 %v1008, %v1007
        %v1061 = vpack.c.b16 %v1010, %v1009
        %v1062 = vpack.c.b16 %v1012, %v1011
        %v1063 = vpack.c.b16 %v1014, %v1013
        %v1064 = vpack.c.b16 %v1016, %v1015
        %v1065 = vpack.c.b16 %v1018, %v1017
        %v1066 = vpack.c.b16 %v1020, %v1019
        %v1067 = vpack.c.b16 %v1022, %v1021
        %v1068 = vpack.c.b16 %v1024, %v1023
        %v1069 = vpack.c.b16 %v1026, %v1025
        %v1070 = vpack.c.b16 %v1028, %v1027
        %v1071 = vpack.c.b16 %v1030, %v1029
        %v1072 = vpack.c.b16 %v1032, %v1031
        %v1073 = vpack.c.b16 %v1034, %v1033
        %v1074 = vpack.c.b16 %v1036, %v1035
        %v1075 = vpack.c.b16 %v1038, %v1037
        %v1076 = vpack.c.b16 %v1040, %v1039
        %v1077 = vpack.c.b16 %v1042, %v1041
        %v1078 = vpack.c.b16 %v1044, %v1043
        %v1079 = vpack.c.b16 %v1046, %v1045
        %v1080 = vpack.c.b16 %v1048, %v1047
        %1113 = vst [vmem:[%s189] sm:$0xff] %v1049
        %1114 = vst [vmem:[%s189 + $0x8] sm:$0xff] %v1050
        %1115 = vst [vmem:[%s189 + $0x10] sm:$0xff] %v1051
        %1116 = vst [vmem:[%s189 + $0x18] sm:$0xff] %v1052
        %1117 = vst [vmem:[%s189 + $0x20] sm:$0xff] %v1053
        %1118 = vst [vmem:[%s189 + $0x28] sm:$0xff] %v1054
        %1119 = vst [vmem:[%s189 + $0x30] sm:$0xff] %v1055
        %1120 = vst [vmem:[%s189 + $0x38] sm:$0xff] %v1056
        %1121 = vst [vmem:[%s189 + $0x40] sm:$0xff] %v1057
        %1122 = vst [vmem:[%s189 + $0x48] sm:$0xff] %v1058
        %1123 = vst [vmem:[%s189 + $0x50] sm:$0xff] %v1059
        %1124 = vst [vmem:[%s189 + $0x58] sm:$0xff] %v1060
        %1125 = vst [vmem:[%s189 + $0x60] sm:$0xff] %v1061
        %1126 = vst [vmem:[%s189 + $0x68] sm:$0xff] %v1062
        %1127 = vst [vmem:[%s189 + $0x70] sm:$0xff] %v1063
        %1128 = vst [vmem:[%s189 + $0x78] sm:$0xff] %v1064
        %1129 = vst [vmem:[%s189 + $0x80] sm:$0xff] %v1065
        %1130 = vst [vmem:[%s189 + $0x88] sm:$0xff] %v1066
        %1131 = vst [vmem:[%s189 + $0x90] sm:$0xff] %v1067
        %1132 = vst [vmem:[%s189 + $0x98] sm:$0xff] %v1068
        %1133 = vst [vmem:[%s189 + $0xa0] sm:$0xff] %v1069
        %1134 = vst [vmem:[%s189 + $0xa8] sm:$0xff] %v1070
        %1135 = vst [vmem:[%s189 + $0xb0] sm:$0xff] %v1071
        %1136 = vst [vmem:[%s189 + $0xb8] sm:$0xff] %v1072
        %1137 = vst [vmem:[%s189 + $0xc0] sm:$0xff] %v1073
        %1138 = vst [vmem:[%s189 + $0xc8] sm:$0xff] %v1074
        %1139 = vst [vmem:[%s189 + $0xd0] sm:$0xff] %v1075
        %1140 = vst [vmem:[%s189 + $0xd8] sm:$0xff] %v1076
        %1141 = vst [vmem:[%s189 + $0xe0] sm:$0xff] %v1077
        %1142 = vst [vmem:[%s189 + $0xe8] sm:$0xff] %v1078
        %1143 = vst [vmem:[%s189 + $0xf0] sm:$0xff] %v1079
        %1144 = vst [vmem:[%s189 + $0xf8] sm:$0xff] %v1080
        %s1145 = sand.u32 %s96, 1
        %s1146 = scalar_lea.sflag [#allocation4], %s1145
        %s1147 = sand.u32 %s96, 1
        %s1148 = smul.addr %s1147, 256
        %s1149 = scalar_lea.vmem [#allocation5], %s1148
        // Predicated region
        $region37: #{tpu_custom_call.1} parent=31 // pred_check
          %p1150 = pneg %p106
        $region38: #{tpu_custom_call.1} parent=31 // pred_check_branch
          %1152 = sbr.rel (%p1150) target = $region40
        $region39: #{tpu_custom_call.1} parent=31 // pred_region
          %s1153 = smul.u32 32, %s20
          %s1155 = ssub.s32 4096, 4096
          %1156 = vsyncadd %s1146, %s1155
          %s1157 = smul.addr %s1153, 2
          %s1158 = smul.addr %s1157, 64
          %s1159 = scalar_lea.hbm %s3, %s1158
          %s1160 = sshll.u32 %s1149, 4
          %s1161 = int_to_ptr.vmem [resolvable:$true] %s1160
          %1166 = dma.vmem_to_hbm [thread:$0]  %s1161, 4096, %s1159, %s1146, 128, 128, 8
        $region40: #{tpu_custom_call.1} parent=31 // pred_fallthru
          _
      $region32: #{tpu_custom_call.1} parent=5 // pred_fallthru
        _
      %p1167 = scmp.le.s32.totalorder 2, %s15
      // Predicated region
      $region41: #{tpu_custom_call.1} parent=5 // pred_check
        %p1168 = pneg %p1167
      $region42: #{tpu_custom_call.1} parent=5 // pred_check_branch
        %1170 = sbr.rel (%p1168) target = $region44
      $region43: #{tpu_custom_call.1} parent=5 // pred_region
        %s1171 = ssub.s32 %s15, 2
        // Predicated region
        $region45: #{tpu_custom_call.1} parent=43 // pred_check
          %p1172 = pneg %p112
        $region46: #{tpu_custom_call.1} parent=43 // pred_check_branch
          %1174 = sbr.rel (%p1172) target = $region48
        $region47: #{tpu_custom_call.1} parent=43 // pred_region
          %s1175 = sand.u32 %s97, 1
          %s1176 = scalar_lea.sflag [#allocation4], %s1175
          %s1177 = sand.u32 %s97, 1
          %s1178 = smul.addr %s1177, 256
          %s1179 = scalar_lea.vmem [#allocation5], %s1178
          %1180 = dma.done %s1176, 4096
        $region48: #{tpu_custom_call.1} parent=43 // pred_fallthru
          _
      $region44: #{tpu_custom_call.1} parent=5 // pred_fallthru
        _
    $region6: #{tpu_custom_call.1} parent=1 // loop_footer
      %s19 = sadd.s32 1, %s15
    $region7: #{tpu_custom_call.1} parent=1 // loop_footer_branch
      %14 = sbr.rel target = $region3
    $region8: #{tpu_custom_call.1} parent=1 // loop_exit
      _
    %1181 = vsyncpa [#allocation3], 1
    %s1182 = scalar_lea.sflag [#allocation3], 1
    %1183 = vsyncpa %s1182, 1
    %1184 = vsyncpa [#allocation4], 1
    %s1185 = scalar_lea.sflag [#allocation4], 1
    %1186 = vsyncpa %s1185, 1

</llo_original>
